<compile_context>
chip_gen: v6e
topology: v6e:2x2x1
jax: 0.10.0
libtpu: 0.0.40
codegen_flags: <defaults>
</compile_context>

<pallas_src>
import functools

import numpy as np
import jax
import jax.numpy as jnp
from jax import lax
from jax.experimental import pallas as pl
from jax.experimental.pallas import tpu as pltpu


_LANES = 128
_CHUNK_ROWS = 8            # one full f32 vreg (8 sublanes x 128 lanes) per channel slab
_MAX_ROWS_PER_TILE = 512   # 512 rows * 128 lanes = 64K pixels per channel per grid step


def _ceil_div(a, b):
    return -(-a // b)


def _round_up(a, b):
    return _ceil_div(a, b) * b


def _diffusion_loss_kernel(scal_ref,                  # SMEM (3, N): [sqrt_a; sqrt_1ma; t_float]
                           sr_ref, hr_ref, e_ref,     # VMEM (1, C*, rows_tile, 128) blocks
                           w_sr_ref, w_hr_ref,        # SMEM (Csr, C), (C, C)
                           bias_ref, wt_ref,          # SMEM (C,), (C,)
                           out_ref,                   # VMEM (1, 1, 1, 128) per-step partial
                           *, hw_valid, mask_tail):
    b = pl.program_id(0)
    s = pl.program_id(1)

    sqrt_a = scal_ref[0, b]
    sqrt_1ma = scal_ref[1, b]
    t_f = scal_ref[2, b]

    csr = sr_ref.shape[1]
    c = hr_ref.shape[1]
    rows = hr_ref.shape[2]
    n_chunks = rows // _CHUNK_ROWS

    # Hoist all tiny SMEM scalar reads out of the chunk loop (sreg math only).
    w_sr = [[w_sr_ref[ci, d] for d in range(c)] for ci in range(csr)]
    w_hr = [[w_hr_ref[ci, d] for d in range(c)] for ci in range(c)]
    shift = [bias_ref[d] + t_f * wt_ref[d] for d in range(c)]

    if mask_tail:
        # Flat element index within one (CHUNK, 128) slab; hoisted out of the loop.
        row_ids = lax.broadcasted_iota(jnp.int32, (_CHUNK_ROWS, _LANES), 0)
        lane_ids = lax.broadcasted_iota(jnp.int32, (_CHUNK_ROWS, _LANES), 1)
        local_flat = row_ids * _LANES + lane_ids
        tile_base = s * (rows * _LANES)

    def chunk_body(ci, acc):
        r0 = pl.multiple_of(ci * _CHUNK_ROWS, _CHUNK_ROWS)

        x_sr = [sr_ref[0, cc, pl.ds(r0, _CHUNK_ROWS), :] for cc in range(csr)]
        e = [e_ref[0, cc, pl.ds(r0, _CHUNK_ROWS), :] for cc in range(c)]
        # q_sample on this chunk: x_noisy = sqrt(a) * x_start + sqrt(1-a) * noise
        x_noisy = [hr_ref[0, cc, pl.ds(r0, _CHUNK_ROWS), :] * sqrt_a + e[cc] * sqrt_1ma
                   for cc in range(c)]

        # Synthetic denoise_fn: 1x1 conv over cat([SR, x_noisy], channel) + bias
        # + time-conditioned per-channel shift (concat-then-conv == split accumulation).
        abs_sum = None
        for d in range(c):
            recon = x_sr[0] * w_sr[0][d]
            for cc in range(1, csr):
                recon = recon + x_sr[cc] * w_sr[cc][d]
            for cc in range(c):
                recon = recon + x_noisy[cc] * w_hr[cc][d]
            recon = recon + shift[d]
            term = jnp.abs(e[d] - recon)
            abs_sum = term if abs_sum is None else abs_sum + term

        if mask_tail:
            flat = local_flat + (tile_base + r0 * _LANES)
            abs_sum = jnp.where(flat < hw_valid, abs_sum, 0.0)
        return acc + abs_sum

    acc = lax.fori_loop(0, n_chunks, chunk_body,
                        jnp.zeros((_CHUNK_ROWS, _LANES), jnp.float32))
    partial = jnp.sum(acc)                          # single XLU reduction per grid step
    out_ref[...] = jnp.full(out_ref.shape, partial, dtype=out_ref.dtype)


def _choose_tiling(hw):
    """rows_tile (multiple of 8, <=512) and num_tiles so rows_tile*num_tiles*128 >= hw."""
    r_raw = _ceil_div(hw, _LANES)
    if r_raw <= _MAX_ROWS_PER_TILE:
        return _round_up(r_raw, _CHUNK_ROWS), 1
    rows_tile = _MAX_ROWS_PER_TILE
    return rows_tile, _ceil_div(r_raw, rows_tile)


def gaussian_diffusion_loss(scalars, x_sr, x_hr, e, w_sr, w_hr, bias, w_t):
    """scalars: (3, N) f32 [sqrt_a; sqrt_1ma; t]; x_sr/x_hr/e: (N, C, H, W) f32 (NCHW)."""
    N, Csr, H, W = x_sr.shape
    _, C, _, _ = x_hr.shape
    HW = H * W

    rows_tile, num_tiles = _choose_tiling(HW)
    r_pad = rows_tile * num_tiles
    hw_pad = r_pad * _LANES
    mask_tail = hw_pad != HW

    def to_lane_dense(x, ch):
        x = x.reshape(N, ch, HW)                       # contiguous reshape, free
        if hw_pad != HW:
            x = jnp.pad(x, ((0, 0), (0, 0), (0, hw_pad - HW)))
        return x.reshape(N, ch, r_pad, _LANES)

    x_sr_t = to_lane_dense(x_sr, Csr)
    x_hr_t = to_lane_dense(x_hr, C)
    e_t = to_lane_dense(e, C)

    kernel = functools.partial(_diffusion_loss_kernel,
                               hw_valid=HW, mask_tail=mask_tail)

    partials = pl.pallas_call(
        kernel,
        out_shape=jax.ShapeDtypeStruct((N, num_tiles, 1, _LANES), jnp.float32),
        grid_spec=pltpu.PrefetchScalarGridSpec(
            num_scalar_prefetch=0,
            grid=(N, num_tiles),
            in_specs=[
                pl.BlockSpec(memory_space=pltpu.SMEM),                          # scalars (3,N)
                pl.BlockSpec((1, Csr, rows_tile, _LANES), lambda b, s: (b, 0, s, 0)),  # SR
                pl.BlockSpec((1, C, rows_tile, _LANES), lambda b, s: (b, 0, s, 0)),    # HR
                pl.BlockSpec((1, C, rows_tile, _LANES), lambda b, s: (b, 0, s, 0)),    # noise e
                pl.BlockSpec(memory_space=pltpu.SMEM),                          # W_sr (Csr,C)
                pl.BlockSpec(memory_space=pltpu.SMEM),                          # W_hr (C,C)
                pl.BlockSpec(memory_space=pltpu.SMEM),                          # bias (C,)
                pl.BlockSpec(memory_space=pltpu.SMEM),                          # w_t  (C,)
            ],
            out_specs=pl.BlockSpec((1, 1, 1, _LANES), lambda b, s: (b, s, 0, 0)),
        ),
        compiler_params=pltpu.CompilerParams(
            # Both axes parallel: no cross-step accumulator, so v7x's two
            # TensorCores can split the (N, num_tiles) grid.
            dimension_semantics=("parallel", "parallel"),
            # ~6 MiB double-buffered working set at 512-row tiles; 32 MiB is
            # safe on v5e/v6e (128 MiB) and within v7x's 64 MiB physical VMEM.
            vmem_limit_bytes=32 * 1024 * 1024),
    )(scalars, x_sr_t, x_hr_t, e_t, w_sr, w_hr, bias, w_t)

    # Tiny final reduction in the wrapper keeps the grid fully parallel.
    return jnp.sum(partials[:, :, 0, 0])


def make_beta_schedule_linear(n_timestep, linear_start=1e-4, linear_end=2e-2):
    return np.linspace(linear_start, linear_end, n_timestep, dtype=np.float64)


def reference_loss(scalars, x_sr, x_hr, e, w_sr, w_hr, bias, w_t):
    """Pure-JAX reference of the same forward pass; x_*: (N, C, HW)."""
    sqrt_a = scalars[0][:, None, None]
    sqrt_1ma = scalars[1][:, None, None]
    t_f = scalars[2][:, None, None]
    x_noisy = x_hr * sqrt_a + e * sqrt_1ma
    x_recon = (jnp.einsum('cd,ncp->ndp', w_sr, x_sr)
               + jnp.einsum('cd,ncp->ndp', w_hr, x_noisy)
               + bias[None, :, None] + t_f * w_t[None, :, None])
    return jnp.sum(jnp.abs(e - x_recon))


if __name__ == "__main__":
    # Small shapes consistent with the module: batch=2, channels=4, spatial=16.
    N, C, H, W = 2, 4, 16, 16
    Csr = C
    HW = H * W
    num_timesteps = 100

    key = jax.random.PRNGKey(0)
    k_hr, k_sr, k_e, k_t = jax.random.split(key, 4)

    # Inputs in PyTorch's NCHW convention.
    x_hr_nchw = jax.random.normal(k_hr, (N, C, H, W), dtype=jnp.float32)
    x_sr_nchw = jax.random.normal(k_sr, (N, Csr, H, W), dtype=jnp.float32)
    e_nchw = jax.random.normal(k_e, (N, C, H, W), dtype=jnp.float32)

    # Noise schedule (linear, as in make_beta_schedule('linear', ...)).
    betas = make_beta_schedule_linear(num_timesteps).astype(np.float32)
    alphas_cumprod = np.cumprod(1.0 - betas, axis=0)

    # t sampling: t = randint(T, size=(n//2+1,)); t = cat([t, T-t-1])[:n]
    t_half = jax.random.randint(k_t, (N // 2 + 1,), 0, num_timesteps)
    t = jnp.concatenate([t_half, num_timesteps - t_half - 1], axis=0)[:N]
    a_t = jnp.asarray(alphas_cumprod)[t]                       # (N,)
    scalars = jnp.stack([jnp.sqrt(a_t),
                         jnp.sqrt(1.0 - a_t),
                         t.astype(jnp.float32)], axis=0)       # (3, N), long axis last

    # Deterministic synthetic denoise_fn parameters (1x1 conv + bias + time shift).
    w_sr = (jnp.arange(Csr * C, dtype=jnp.float32).reshape(Csr, C) * 0.01 - 0.1)
    w_hr = jnp.sin(jnp.arange(C * C, dtype=jnp.float32)).reshape(C, C) * 0.1
    bias = jnp.arange(C, dtype=jnp.float32) * 0.01
    w_t = jnp.cos(jnp.arange(C, dtype=jnp.float32)) * 0.001

    loss = gaussian_diffusion_loss(scalars, x_sr_nchw, x_hr_nchw, e_nchw,
                                   w_sr, w_hr, bias, w_t)
    loss = jax.block_until_ready(loss)

    ref = reference_loss(scalars,
                         x_sr_nchw.reshape(N, Csr, HW),
                         x_hr_nchw.reshape(N, C, HW),
                         e_nchw.reshape(N, C, HW),
                         w_sr, w_hr, bias, w_t)
    ref = jax.block_until_ready(ref)

    np.testing.assert_allclose(np.asarray(loss), np.asarray(ref), rtol=1e-3, atol=1e-3)

    # TODO(synk): p_sample_loop / super_resolution (iterative DDIM sampling driven by an
    # external U-Net denoise_fn) is inference-only control flow outside forward() and is
    # not implemented as a kernel here.
    print("KERNEL_OK")
</pallas_src>

<mosaic_0001>
module attributes {stable_mosaic.version = 11 : i64} {
  func.func @_diffusion_loss_kernel(%arg0: i32, %arg1: i32, %arg2: memref<3x2xf32, #tpu.memory_space<smem>>, %arg3: memref<1x4x8x128xf32, #tpu.memory_space<vmem>>, %arg4: memref<1x4x8x128xf32, #tpu.memory_space<vmem>>, %arg5: memref<1x4x8x128xf32, #tpu.memory_space<vmem>>, %arg6: memref<4x4xf32, #tpu.memory_space<smem>>, %arg7: memref<4x4xf32, #tpu.memory_space<smem>>, %arg8: memref<4xf32, #tpu.memory_space<smem>>, %arg9: memref<4xf32, #tpu.memory_space<smem>>, %arg10: memref<1x1x1x128xf32, #tpu.memory_space<vmem>>) attributes {dimension_semantics = [#tpu.dimension_semantics<parallel>, #tpu.dimension_semantics<parallel>], iteration_bounds = array<i64: 2, 1>, scalar_prefetch = 0 : i64, scratch_operands = 0 : i64, tpu.core_type = #tpu.core_type<tc>, window_params = [{transform_indices = @transform_0, window_bounds = array<i64: 3, 2>}, {transform_indices = @transform_1, window_bounds = array<i64: 1, 4, 8, 128>}, {transform_indices = @transform_2, window_bounds = array<i64: 1, 4, 8, 128>}, {transform_indices = @transform_3, window_bounds = array<i64: 1, 4, 8, 128>}, {transform_indices = @transform_4, window_bounds = array<i64: 4, 4>}, {transform_indices = @transform_5, window_bounds = array<i64: 4, 4>}, {transform_indices = @transform_6, window_bounds = array<i64: 4>}, {transform_indices = @transform_7, window_bounds = array<i64: 4>}, {transform_indices = @transform_8, window_bounds = array<i64: 1, 1, 1, 128>}]} {
    %c0 = arith.constant 0 : index
    %0 = arith.index_cast %arg0 : i32 to index
    %1 = memref.load %arg2[%c0, %0] : memref<3x2xf32, #tpu.memory_space<smem>>
    %c1 = arith.constant 1 : index
    %2 = arith.index_cast %arg0 : i32 to index
    %3 = memref.load %arg2[%c1, %2] : memref<3x2xf32, #tpu.memory_space<smem>>
    %c2 = arith.constant 2 : index
    %4 = arith.index_cast %arg0 : i32 to index
    %5 = memref.load %arg2[%c2, %4] : memref<3x2xf32, #tpu.memory_space<smem>>
    %c0_0 = arith.constant 0 : index
    %c0_1 = arith.constant 0 : index
    %6 = memref.load %arg6[%c0_0, %c0_1] : memref<4x4xf32, #tpu.memory_space<smem>>
    %c0_2 = arith.constant 0 : index
    %c1_3 = arith.constant 1 : index
    %7 = memref.load %arg6[%c0_2, %c1_3] : memref<4x4xf32, #tpu.memory_space<smem>>
    %c0_4 = arith.constant 0 : index
    %c2_5 = arith.constant 2 : index
    %8 = memref.load %arg6[%c0_4, %c2_5] : memref<4x4xf32, #tpu.memory_space<smem>>
    %c0_6 = arith.constant 0 : index
    %c3 = arith.constant 3 : index
    %9 = memref.load %arg6[%c0_6, %c3] : memref<4x4xf32, #tpu.memory_space<smem>>
    %c1_7 = arith.constant 1 : index
    %c0_8 = arith.constant 0 : index
    %10 = memref.load %arg6[%c1_7, %c0_8] : memref<4x4xf32, #tpu.memory_space<smem>>
    %c1_9 = arith.constant 1 : index
    %c1_10 = arith.constant 1 : index
    %11 = memref.load %arg6[%c1_9, %c1_10] : memref<4x4xf32, #tpu.memory_space<smem>>
    %c1_11 = arith.constant 1 : index
    %c2_12 = arith.constant 2 : index
    %12 = memref.load %arg6[%c1_11, %c2_12] : memref<4x4xf32, #tpu.memory_space<smem>>
    %c1_13 = arith.constant 1 : index
    %c3_14 = arith.constant 3 : index
    %13 = memref.load %arg6[%c1_13, %c3_14] : memref<4x4xf32, #tpu.memory_space<smem>>
    %c2_15 = arith.constant 2 : index
    %c0_16 = arith.constant 0 : index
    %14 = memref.load %arg6[%c2_15, %c0_16] : memref<4x4xf32, #tpu.memory_space<smem>>
    %c2_17 = arith.constant 2 : index
    %c1_18 = arith.constant 1 : index
    %15 = memref.load %arg6[%c2_17, %c1_18] : memref<4x4xf32, #tpu.memory_space<smem>>
    %c2_19 = arith.constant 2 : index
    %c2_20 = arith.constant 2 : index
    %16 = memref.load %arg6[%c2_19, %c2_20] : memref<4x4xf32, #tpu.memory_space<smem>>
    %c2_21 = arith.constant 2 : index
    %c3_22 = arith.constant 3 : index
    %17 = memref.load %arg6[%c2_21, %c3_22] : memref<4x4xf32, #tpu.memory_space<smem>>
    %c3_23 = arith.constant 3 : index
    %c0_24 = arith.constant 0 : index
    %18 = memref.load %arg6[%c3_23, %c0_24] : memref<4x4xf32, #tpu.memory_space<smem>>
    %c3_25 = arith.constant 3 : index
    %c1_26 = arith.constant 1 : index
    %19 = memref.load %arg6[%c3_25, %c1_26] : memref<4x4xf32, #tpu.memory_space<smem>>
    %c3_27 = arith.constant 3 : index
    %c2_28 = arith.constant 2 : index
    %20 = memref.load %arg6[%c3_27, %c2_28] : memref<4x4xf32, #tpu.memory_space<smem>>
    %c3_29 = arith.constant 3 : index
    %c3_30 = arith.constant 3 : index
    %21 = memref.load %arg6[%c3_29, %c3_30] : memref<4x4xf32, #tpu.memory_space<smem>>
    %c0_31 = arith.constant 0 : index
    %c0_32 = arith.constant 0 : index
    %22 = memref.load %arg7[%c0_31, %c0_32] : memref<4x4xf32, #tpu.memory_space<smem>>
    %c0_33 = arith.constant 0 : index
    %c1_34 = arith.constant 1 : index
    %23 = memref.load %arg7[%c0_33, %c1_34] : memref<4x4xf32, #tpu.memory_space<smem>>
    %c0_35 = arith.constant 0 : index
    %c2_36 = arith.constant 2 : index
    %24 = memref.load %arg7[%c0_35, %c2_36] : memref<4x4xf32, #tpu.memory_space<smem>>
    %c0_37 = arith.constant 0 : index
    %c3_38 = arith.constant 3 : index
    %25 = memref.load %arg7[%c0_37, %c3_38] : memref<4x4xf32, #tpu.memory_space<smem>>
    %c1_39 = arith.constant 1 : index
    %c0_40 = arith.constant 0 : index
    %26 = memref.load %arg7[%c1_39, %c0_40] : memref<4x4xf32, #tpu.memory_space<smem>>
    %c1_41 = arith.constant 1 : index
    %c1_42 = arith.constant 1 : index
    %27 = memref.load %arg7[%c1_41, %c1_42] : memref<4x4xf32, #tpu.memory_space<smem>>
    %c1_43 = arith.constant 1 : index
    %c2_44 = arith.constant 2 : index
    %28 = memref.load %arg7[%c1_43, %c2_44] : memref<4x4xf32, #tpu.memory_space<smem>>
    %c1_45 = arith.constant 1 : index
    %c3_46 = arith.constant 3 : index
    %29 = memref.load %arg7[%c1_45, %c3_46] : memref<4x4xf32, #tpu.memory_space<smem>>
    %c2_47 = arith.constant 2 : index
    %c0_48 = arith.constant 0 : index
    %30 = memref.load %arg7[%c2_47, %c0_48] : memref<4x4xf32, #tpu.memory_space<smem>>
    %c2_49 = arith.constant 2 : index
    %c1_50 = arith.constant 1 : index
    %31 = memref.load %arg7[%c2_49, %c1_50] : memref<4x4xf32, #tpu.memory_space<smem>>
    %c2_51 = arith.constant 2 : index
    %c2_52 = arith.constant 2 : index
    %32 = memref.load %arg7[%c2_51, %c2_52] : memref<4x4xf32, #tpu.memory_space<smem>>
    %c2_53 = arith.constant 2 : index
    %c3_54 = arith.constant 3 : index
    %33 = memref.load %arg7[%c2_53, %c3_54] : memref<4x4xf32, #tpu.memory_space<smem>>
    %c3_55 = arith.constant 3 : index
    %c0_56 = arith.constant 0 : index
    %34 = memref.load %arg7[%c3_55, %c0_56] : memref<4x4xf32, #tpu.memory_space<smem>>
    %c3_57 = arith.constant 3 : index
    %c1_58 = arith.constant 1 : index
    %35 = memref.load %arg7[%c3_57, %c1_58] : memref<4x4xf32, #tpu.memory_space<smem>>
    %c3_59 = arith.constant 3 : index
    %c2_60 = arith.constant 2 : index
    %36 = memref.load %arg7[%c3_59, %c2_60] : memref<4x4xf32, #tpu.memory_space<smem>>
    %c3_61 = arith.constant 3 : index
    %c3_62 = arith.constant 3 : index
    %37 = memref.load %arg7[%c3_61, %c3_62] : memref<4x4xf32, #tpu.memory_space<smem>>
    %c0_63 = arith.constant 0 : index
    %38 = memref.load %arg8[%c0_63] : memref<4xf32, #tpu.memory_space<smem>>
    %c0_64 = arith.constant 0 : index
    %39 = memref.load %arg9[%c0_64] : memref<4xf32, #tpu.memory_space<smem>>
    %40 = arith.mulf %5, %39 : f32
    %41 = arith.addf %38, %40 : f32
    %c1_65 = arith.constant 1 : index
    %42 = memref.load %arg8[%c1_65] : memref<4xf32, #tpu.memory_space<smem>>
    %c1_66 = arith.constant 1 : index
    %43 = memref.load %arg9[%c1_66] : memref<4xf32, #tpu.memory_space<smem>>
    %44 = arith.mulf %5, %43 : f32
    %45 = arith.addf %42, %44 : f32
    %c2_67 = arith.constant 2 : index
    %46 = memref.load %arg8[%c2_67] : memref<4xf32, #tpu.memory_space<smem>>
    %c2_68 = arith.constant 2 : index
    %47 = memref.load %arg9[%c2_68] : memref<4xf32, #tpu.memory_space<smem>>
    %48 = arith.mulf %5, %47 : f32
    %49 = arith.addf %46, %48 : f32
    %c3_69 = arith.constant 3 : index
    %50 = memref.load %arg8[%c3_69] : memref<4xf32, #tpu.memory_space<smem>>
    %c3_70 = arith.constant 3 : index
    %51 = memref.load %arg9[%c3_70] : memref<4xf32, #tpu.memory_space<smem>>
    %52 = arith.mulf %5, %51 : f32
    %53 = arith.addf %50, %52 : f32
    %54 = tpu.iota {dimensions = array<i32: 0>} : vector<8x128xi32>
    %55 = tpu.iota {dimensions = array<i32: 1>} : vector<8x128xi32>
    %c128_i32 = arith.constant 128 : i32
    %56 = vector.broadcast %c128_i32 : i32 to vector<8x128xi32>
    %57 = arith.muli %54, %56 : vector<8x128xi32>
    %58 = arith.addi %57, %55 : vector<8x128xi32>
    %c1024_i32 = arith.constant 1024 : i32
    %59 = arith.muli %arg1, %c1024_i32 : i32
    %cst = arith.constant 0.000000e+00 : f32
    %60 = vector.broadcast %cst : f32 to vector<8x128xf32>
    %c0_i32 = arith.constant 0 : i32
    %c8_i32 = arith.constant 8 : i32
    %61 = arith.muli %c0_i32, %c8_i32 : i32
    %62 = tpu.assume_multiple %61, 8 : i32
    %c0_71 = arith.constant 0 : index
    %c0_72 = arith.constant 0 : index
    %63 = arith.index_cast %62 : i32 to index
    %c0_73 = arith.constant 0 : index
    %64 = vector.load %arg3[%c0_71, %c0_72, %63, %c0_73] : memref<1x4x8x128xf32, #tpu.memory_space<vmem>>, vector<1x1x8x128xf32>
    %65 = vector.shape_cast %64 : vector<1x1x8x128xf32> to vector<8x128xf32>
    %c0_74 = arith.constant 0 : index
    %c1_75 = arith.constant 1 : index
    %66 = arith.index_cast %62 : i32 to index
    %c0_76 = arith.constant 0 : index
    %67 = vector.load %arg3[%c0_74, %c1_75, %66, %c0_76] : memref<1x4x8x128xf32, #tpu.memory_space<vmem>>, vector<1x1x8x128xf32>
    %68 = vector.shape_cast %67 : vector<1x1x8x128xf32> to vector<8x128xf32>
    %c0_77 = arith.constant 0 : index
    %c2_78 = arith.constant 2 : index
    %69 = arith.index_cast %62 : i32 to index
    %c0_79 = arith.constant 0 : index
    %70 = vector.load %arg3[%c0_77, %c2_78, %69, %c0_79] : memref<1x4x8x128xf32, #tpu.memory_space<vmem>>, vector<1x1x8x128xf32>
    %71 = vector.shape_cast %70 : vector<1x1x8x128xf32> to vector<8x128xf32>
    %c0_80 = arith.constant 0 : index
    %c3_81 = arith.constant 3 : index
    %72 = arith.index_cast %62 : i32 to index
    %c0_82 = arith.constant 0 : index
    %73 = vector.load %arg3[%c0_80, %c3_81, %72, %c0_82] : memref<1x4x8x128xf32, #tpu.memory_space<vmem>>, vector<1x1x8x128xf32>
    %74 = vector.shape_cast %73 : vector<1x1x8x128xf32> to vector<8x128xf32>
    %c0_83 = arith.constant 0 : index
    %c0_84 = arith.constant 0 : index
    %75 = arith.index_cast %62 : i32 to index
    %c0_85 = arith.constant 0 : index
    %76 = vector.load %arg5[%c0_83, %c0_84, %75, %c0_85] : memref<1x4x8x128xf32, #tpu.memory_space<vmem>>, vector<1x1x8x128xf32>
    %77 = vector.shape_cast %76 : vector<1x1x8x128xf32> to vector<8x128xf32>
    %c0_86 = arith.constant 0 : index
    %c1_87 = arith.constant 1 : index
    %78 = arith.index_cast %62 : i32 to index
    %c0_88 = arith.constant 0 : index
    %79 = vector.load %arg5[%c0_86, %c1_87, %78, %c0_88] : memref<1x4x8x128xf32, #tpu.memory_space<vmem>>, vector<1x1x8x128xf32>
    %80 = vector.shape_cast %79 : vector<1x1x8x128xf32> to vector<8x128xf32>
    %c0_89 = arith.constant 0 : index
    %c2_90 = arith.constant 2 : index
    %81 = arith.index_cast %62 : i32 to index
    %c0_91 = arith.constant 0 : index
    %82 = vector.load %arg5[%c0_89, %c2_90, %81, %c0_91] : memref<1x4x8x128xf32, #tpu.memory_space<vmem>>, vector<1x1x8x128xf32>
    %83 = vector.shape_cast %82 : vector<1x1x8x128xf32> to vector<8x128xf32>
    %c0_92 = arith.constant 0 : index
    %c3_93 = arith.constant 3 : index
    %84 = arith.index_cast %62 : i32 to index
    %c0_94 = arith.constant 0 : index
    %85 = vector.load %arg5[%c0_92, %c3_93, %84, %c0_94] : memref<1x4x8x128xf32, #tpu.memory_space<vmem>>, vector<1x1x8x128xf32>
    %86 = vector.shape_cast %85 : vector<1x1x8x128xf32> to vector<8x128xf32>
    %c0_95 = arith.constant 0 : index
    %c0_96 = arith.constant 0 : index
    %87 = arith.index_cast %62 : i32 to index
    %c0_97 = arith.constant 0 : index
    %88 = vector.load %arg4[%c0_95, %c0_96, %87, %c0_97] : memref<1x4x8x128xf32, #tpu.memory_space<vmem>>, vector<1x1x8x128xf32>
    %89 = vector.shape_cast %88 : vector<1x1x8x128xf32> to vector<8x128xf32>
    %90 = vector.broadcast %1 : f32 to vector<8x128xf32>
    %91 = arith.mulf %89, %90 : vector<8x128xf32>
    %92 = vector.broadcast %3 : f32 to vector<8x128xf32>
    %93 = arith.mulf %77, %92 : vector<8x128xf32>
    %94 = arith.addf %91, %93 : vector<8x128xf32>
    %c0_98 = arith.constant 0 : index
    %c1_99 = arith.constant 1 : index
    %95 = arith.index_cast %62 : i32 to index
    %c0_100 = arith.constant 0 : index
    %96 = vector.load %arg4[%c0_98, %c1_99, %95, %c0_100] : memref<1x4x8x128xf32, #tpu.memory_space<vmem>>, vector<1x1x8x128xf32>
    %97 = vector.shape_cast %96 : vector<1x1x8x128xf32> to vector<8x128xf32>
    %98 = vector.broadcast %1 : f32 to vector<8x128xf32>
    %99 = arith.mulf %97, %98 : vector<8x128xf32>
    %100 = vector.broadcast %3 : f32 to vector<8x128xf32>
    %101 = arith.mulf %80, %100 : vector<8x128xf32>
    %102 = arith.addf %99, %101 : vector<8x128xf32>
    %c0_101 = arith.constant 0 : index
    %c2_102 = arith.constant 2 : index
    %103 = arith.index_cast %62 : i32 to index
    %c0_103 = arith.constant 0 : index
    %104 = vector.load %arg4[%c0_101, %c2_102, %103, %c0_103] : memref<1x4x8x128xf32, #tpu.memory_space<vmem>>, vector<1x1x8x128xf32>
    %105 = vector.shape_cast %104 : vector<1x1x8x128xf32> to vector<8x128xf32>
    %106 = vector.broadcast %1 : f32 to vector<8x128xf32>
    %107 = arith.mulf %105, %106 : vector<8x128xf32>
    %108 = vector.broadcast %3 : f32 to vector<8x128xf32>
    %109 = arith.mulf %83, %108 : vector<8x128xf32>
    %110 = arith.addf %107, %109 : vector<8x128xf32>
    %c0_104 = arith.constant 0 : index
    %c3_105 = arith.constant 3 : index
    %111 = arith.index_cast %62 : i32 to index
    %c0_106 = arith.constant 0 : index
    %112 = vector.load %arg4[%c0_104, %c3_105, %111, %c0_106] : memref<1x4x8x128xf32, #tpu.memory_space<vmem>>, vector<1x1x8x128xf32>
    %113 = vector.shape_cast %112 : vector<1x1x8x128xf32> to vector<8x128xf32>
    %114 = vector.broadcast %1 : f32 to vector<8x128xf32>
    %115 = arith.mulf %113, %114 : vector<8x128xf32>
    %116 = vector.broadcast %3 : f32 to vector<8x128xf32>
    %117 = arith.mulf %86, %116 : vector<8x128xf32>
    %118 = arith.addf %115, %117 : vector<8x128xf32>
    %119 = vector.broadcast %6 : f32 to vector<8x128xf32>
    %120 = arith.mulf %65, %119 : vector<8x128xf32>
    %121 = vector.broadcast %10 : f32 to vector<8x128xf32>
    %122 = arith.mulf %68, %121 : vector<8x128xf32>
    %123 = arith.addf %120, %122 : vector<8x128xf32>
    %124 = vector.broadcast %14 : f32 to vector<8x128xf32>
    %125 = arith.mulf %71, %124 : vector<8x128xf32>
    %126 = arith.addf %123, %125 : vector<8x128xf32>
    %127 = vector.broadcast %18 : f32 to vector<8x128xf32>
    %128 = arith.mulf %74, %127 : vector<8x128xf32>
    %129 = arith.addf %126, %128 : vector<8x128xf32>
    %130 = vector.broadcast %22 : f32 to vector<8x128xf32>
    %131 = arith.mulf %94, %130 : vector<8x128xf32>
    %132 = arith.addf %129, %131 : vector<8x128xf32>
    %133 = vector.broadcast %26 : f32 to vector<8x128xf32>
    %134 = arith.mulf %102, %133 : vector<8x128xf32>
    %135 = arith.addf %132, %134 : vector<8x128xf32>
    %136 = vector.broadcast %30 : f32 to vector<8x128xf32>
    %137 = arith.mulf %110, %136 : vector<8x128xf32>
    %138 = arith.addf %135, %137 : vector<8x128xf32>
    %139 = vector.broadcast %34 : f32 to vector<8x128xf32>
    %140 = arith.mulf %118, %139 : vector<8x128xf32>
    %141 = arith.addf %138, %140 : vector<8x128xf32>
    %142 = vector.broadcast %41 : f32 to vector<8x128xf32>
    %143 = arith.addf %141, %142 : vector<8x128xf32>
    %144 = arith.subf %77, %143 : vector<8x128xf32>
    %145 = math.absf %144 : vector<8x128xf32>
    %146 = vector.broadcast %7 : f32 to vector<8x128xf32>
    %147 = arith.mulf %65, %146 : vector<8x128xf32>
    %148 = vector.broadcast %11 : f32 to vector<8x128xf32>
    %149 = arith.mulf %68, %148 : vector<8x128xf32>
    %150 = arith.addf %147, %149 : vector<8x128xf32>
    %151 = vector.broadcast %15 : f32 to vector<8x128xf32>
    %152 = arith.mulf %71, %151 : vector<8x128xf32>
    %153 = arith.addf %150, %152 : vector<8x128xf32>
    %154 = vector.broadcast %19 : f32 to vector<8x128xf32>
    %155 = arith.mulf %74, %154 : vector<8x128xf32>
    %156 = arith.addf %153, %155 : vector<8x128xf32>
    %157 = vector.broadcast %23 : f32 to vector<8x128xf32>
    %158 = arith.mulf %94, %157 : vector<8x128xf32>
    %159 = arith.addf %156, %158 : vector<8x128xf32>
    %160 = vector.broadcast %27 : f32 to vector<8x128xf32>
    %161 = arith.mulf %102, %160 : vector<8x128xf32>
    %162 = arith.addf %159, %161 : vector<8x128xf32>
    %163 = vector.broadcast %31 : f32 to vector<8x128xf32>
    %164 = arith.mulf %110, %163 : vector<8x128xf32>
    %165 = arith.addf %162, %164 : vector<8x128xf32>
    %166 = vector.broadcast %35 : f32 to vector<8x128xf32>
    %167 = arith.mulf %118, %166 : vector<8x128xf32>
    %168 = arith.addf %165, %167 : vector<8x128xf32>
    %169 = vector.broadcast %45 : f32 to vector<8x128xf32>
    %170 = arith.addf %168, %169 : vector<8x128xf32>
    %171 = arith.subf %80, %170 : vector<8x128xf32>
    %172 = math.absf %171 : vector<8x128xf32>
    %173 = arith.addf %145, %172 : vector<8x128xf32>
    %174 = vector.broadcast %8 : f32 to vector<8x128xf32>
    %175 = arith.mulf %65, %174 : vector<8x128xf32>
    %176 = vector.broadcast %12 : f32 to vector<8x128xf32>
    %177 = arith.mulf %68, %176 : vector<8x128xf32>
    %178 = arith.addf %175, %177 : vector<8x128xf32>
    %179 = vector.broadcast %16 : f32 to vector<8x128xf32>
    %180 = arith.mulf %71, %179 : vector<8x128xf32>
    %181 = arith.addf %178, %180 : vector<8x128xf32>
    %182 = vector.broadcast %20 : f32 to vector<8x128xf32>
    %183 = arith.mulf %74, %182 : vector<8x128xf32>
    %184 = arith.addf %181, %183 : vector<8x128xf32>
    %185 = vector.broadcast %24 : f32 to vector<8x128xf32>
    %186 = arith.mulf %94, %185 : vector<8x128xf32>
    %187 = arith.addf %184, %186 : vector<8x128xf32>
    %188 = vector.broadcast %28 : f32 to vector<8x128xf32>
    %189 = arith.mulf %102, %188 : vector<8x128xf32>
    %190 = arith.addf %187, %189 : vector<8x128xf32>
    %191 = vector.broadcast %32 : f32 to vector<8x128xf32>
    %192 = arith.mulf %110, %191 : vector<8x128xf32>
    %193 = arith.addf %190, %192 : vector<8x128xf32>
    %194 = vector.broadcast %36 : f32 to vector<8x128xf32>
    %195 = arith.mulf %118, %194 : vector<8x128xf32>
    %196 = arith.addf %193, %195 : vector<8x128xf32>
    %197 = vector.broadcast %49 : f32 to vector<8x128xf32>
    %198 = arith.addf %196, %197 : vector<8x128xf32>
    %199 = arith.subf %83, %198 : vector<8x128xf32>
    %200 = math.absf %199 : vector<8x128xf32>
    %201 = arith.addf %173, %200 : vector<8x128xf32>
    %202 = vector.broadcast %9 : f32 to vector<8x128xf32>
    %203 = arith.mulf %65, %202 : vector<8x128xf32>
    %204 = vector.broadcast %13 : f32 to vector<8x128xf32>
    %205 = arith.mulf %68, %204 : vector<8x128xf32>
    %206 = arith.addf %203, %205 : vector<8x128xf32>
    %207 = vector.broadcast %17 : f32 to vector<8x128xf32>
    %208 = arith.mulf %71, %207 : vector<8x128xf32>
    %209 = arith.addf %206, %208 : vector<8x128xf32>
    %210 = vector.broadcast %21 : f32 to vector<8x128xf32>
    %211 = arith.mulf %74, %210 : vector<8x128xf32>
    %212 = arith.addf %209, %211 : vector<8x128xf32>
    %213 = vector.broadcast %25 : f32 to vector<8x128xf32>
    %214 = arith.mulf %94, %213 : vector<8x128xf32>
    %215 = arith.addf %212, %214 : vector<8x128xf32>
    %216 = vector.broadcast %29 : f32 to vector<8x128xf32>
    %217 = arith.mulf %102, %216 : vector<8x128xf32>
    %218 = arith.addf %215, %217 : vector<8x128xf32>
    %219 = vector.broadcast %33 : f32 to vector<8x128xf32>
    %220 = arith.mulf %110, %219 : vector<8x128xf32>
    %221 = arith.addf %218, %220 : vector<8x128xf32>
    %222 = vector.broadcast %37 : f32 to vector<8x128xf32>
    %223 = arith.mulf %118, %222 : vector<8x128xf32>
    %224 = arith.addf %221, %223 : vector<8x128xf32>
    %225 = vector.broadcast %53 : f32 to vector<8x128xf32>
    %226 = arith.addf %224, %225 : vector<8x128xf32>
    %227 = arith.subf %86, %226 : vector<8x128xf32>
    %228 = math.absf %227 : vector<8x128xf32>
    %229 = arith.addf %201, %228 : vector<8x128xf32>
    %c128_i32_107 = arith.constant 128 : i32
    %230 = arith.muli %62, %c128_i32_107 : i32
    %231 = arith.addi %59, %230 : i32
    %232 = vector.broadcast %231 : i32 to vector<8x128xi32>
    %233 = arith.addi %58, %232 : vector<8x128xi32>
    %c256_i32 = arith.constant 256 : i32
    %234 = vector.broadcast %c256_i32 : i32 to vector<8x128xi32>
    %235 = arith.cmpi slt, %233, %234 : vector<8x128xi32>
    %cst_108 = arith.constant 0.000000e+00 : f32
    %236 = vector.broadcast %cst_108 : f32 to vector<8x128xf32>
    %237 = arith.select %235, %229, %236 : vector<8x128xi1>, vector<8x128xf32>
    %238 = arith.addf %60, %237 : vector<8x128xf32>
    %c1_i32 = arith.constant 1 : i32
    %239 = vector.shape_cast %238 : vector<8x128xf32> to vector<1x8x128xf32>
    %cst_109 = arith.constant dense<0.000000e+00> : vector<1xf32>
    %240 = vector.multi_reduction <add>, %239, %cst_109 [1, 2] : vector<1x8x128xf32> to vector<1xf32>
    %241 = vector.shape_cast %240 : vector<1xf32> to vector<1x1x1xf32>
    %242 = vector.extract %241[0, 0, 0] : f32 from vector<1x1x1xf32>
    %243 = vector.broadcast %242 : f32 to vector<1x1x1x128xf32>
    %c0_110 = arith.constant 0 : index
    %c0_111 = arith.constant 0 : index
    %c0_112 = arith.constant 0 : index
    %c0_113 = arith.constant 0 : index
    %244 = vector.load %arg10[%c0_110, %c0_111, %c0_112, %c0_113] : memref<1x1x1x128xf32, #tpu.memory_space<vmem>>, vector<1x1x1x128xf32>
    tpu.vector_store %arg10[%c0_110, %c0_111, %c0_112, %c0_113], %243 {strides = array<i32>} : memref<1x1x1x128xf32, #tpu.memory_space<vmem>>, vector<1x1x1x128xf32>,
    return
  }
  func.func @transform_0(%arg0: i32, %arg1: i32) -> (i32, i32) {
    %c0_i32 = arith.constant 0 : i32
    %c0_i32_0 = arith.constant 0 : i32
    %c0_i32_1 = arith.constant 0 : i32
    return %c0_i32, %c0_i32_0 : i32, i32
  }
  func.func @transform_1(%arg0: i32, %arg1: i32) -> (i32, i32, i32, i32) {
    %c0_i32 = arith.constant 0 : i32
    %c0_i32_0 = arith.constant 0 : i32
    %c0_i32_1 = arith.constant 0 : i32
    return %arg0, %c0_i32, %arg1, %c0_i32_0 : i32, i32, i32, i32
  }
  func.func @transform_2(%arg0: i32, %arg1: i32) -> (i32, i32, i32, i32) {
    %c0_i32 = arith.constant 0 : i32
    %c0_i32_0 = arith.constant 0 : i32
    %c0_i32_1 = arith.constant 0 : i32
    return %arg0, %c0_i32, %arg1, %c0_i32_0 : i32, i32, i32, i32
  }
  func.func @transform_3(%arg0: i32, %arg1: i32) -> (i32, i32, i32, i32) {
    %c0_i32 = arith.constant 0 : i32
    %c0_i32_0 = arith.constant 0 : i32
    %c0_i32_1 = arith.constant 0 : i32
    return %arg0, %c0_i32, %arg1, %c0_i32_0 : i32, i32, i32, i32
  }
  func.func @transform_4(%arg0: i32, %arg1: i32) -> (i32, i32) {
    %c0_i32 = arith.constant 0 : i32
    %c0_i32_0 = arith.constant 0 : i32
    %c0_i32_1 = arith.constant 0 : i32
    return %c0_i32, %c0_i32_0 : i32, i32
  }
  func.func @transform_5(%arg0: i32, %arg1: i32) -> (i32, i32) {
    %c0_i32 = arith.constant 0 : i32
    %c0_i32_0 = arith.constant 0 : i32
    %c0_i32_1 = arith.constant 0 : i32
    return %c0_i32, %c0_i32_0 : i32, i32
  }
  func.func @transform_6(%arg0: i32, %arg1: i32) -> i32 {
    %c0_i32 = arith.constant 0 : i32
    %c0_i32_0 = arith.constant 0 : i32
    return %c0_i32 : i32
  }
  func.func @transform_7(%arg0: i32, %arg1: i32) -> i32 {
    %c0_i32 = arith.constant 0 : i32
    %c0_i32_0 = arith.constant 0 : i32
    return %c0_i32 : i32
  }
  func.func @transform_8(%arg0: i32, %arg1: i32) -> (i32, i32, i32, i32) {
    %c0_i32 = arith.constant 0 : i32
    %c0_i32_0 = arith.constant 0 : i32
    %c0_i32_1 = arith.constant 0 : i32
    return %arg0, %arg1, %c0_i32, %c0_i32_0 : i32, i32, i32, i32
  }
}

</mosaic_0001>

<llo_original>
// kernel: tpu_custom_call.1
$region0: #{tpu_custom_call.1}
  #allocation0 [shape = 'u32[]', space=smem, size = 0x4, offset = 0x4, fixed_abs, tag = 'smem constant byte address 0x4 - core index']
  #allocation1 [shape = 'u32[144,128]{1,0:T(1,128)}', space=vmem, size = 0x12000, scoped, tag = 'internal scratch']
  %s0 = inlined_call_operand.vmem [shape: f32[3,2], index: 0, kind: input, shape index: {}]
  %s1 = inlined_call_operand.hbm [shape: f32[2,4,8,128], index: 1, kind: input, shape index: {}]
  %s2 = inlined_call_operand.hbm [shape: f32[2,4,8,128], index: 2, kind: input, shape index: {}]
  %s3 = inlined_call_operand.hbm [shape: f32[2,4,8,128], index: 3, kind: input, shape index: {}]
  %s4 = inlined_call_operand.vmem [shape: f32[4,4], index: 4, kind: input, shape index: {}]
  %s5 = inlined_call_operand.vmem [shape: f32[4,4], index: 5, kind: input, shape index: {}]
  %s6 = inlined_call_operand.vmem [shape: f32[4], index: 6, kind: input, shape index: {}]
  %s7 = inlined_call_operand.vmem [shape: f32[4], index: 7, kind: input, shape index: {}]
  %s8 = inlined_call_operand.hbm [shape: f32[2,1,1,128], index: 8, kind: output, shape index: {}]
  %s9 = sld [smem:[#allocation0]]
  $region97: #{tpu_custom_call.1} parent=0
    _
  %s11 = ssub.s32 1, %s9
  %s12 = scalar_select 0, %s11, %s9
  $region1: #{tpu_custom_call.1} parent=0
    #allocation2 [shape = 'u8[2048]{0}', space=smem, size = 0x800, scoped, tag = 'input window, operand 0, single buffered']
    #allocation3 [shape = 's32[2]{0}', space=sflag, size = 0x8, scoped, tag = 'scoped memory for tpu_custom_call.1']
    #allocation4 [shape = 's32[2]{0}', space=sflag, size = 0x8, scoped, tag = 'scoped memory for tpu_custom_call.1']
    #allocation5 [shape = 's32[2]{0}', space=sflag, size = 0x8, scoped, tag = 'scoped memory for tpu_custom_call.1']
    #allocation6 [shape = 'u8[32768]{0}', space=vmem, size = 0x8000, scoped, tag = 'input window, operand 1']
    #allocation7 [shape = 'u8[32768]{0}', space=vmem, size = 0x8000, scoped, tag = 'input window, operand 2']
    #allocation8 [shape = 's32[2]{0}', space=sflag, size = 0x8, scoped, tag = 'scoped memory for tpu_custom_call.1']
    #allocation9 [shape = 'u8[32768]{0}', space=vmem, size = 0x8000, scoped, tag = 'input window, operand 3']
    #allocation10 [shape = 'u8[2048]{0}', space=smem, size = 0x800, scoped, tag = 'input window, operand 4, single buffered']
    #allocation11 [shape = 's32[1]{0}', space=sflag, size = 0x4, scoped, tag = 'scoped memory for tpu_custom_call.1']
    #allocation12 [shape = 'u8[2048]{0}', space=smem, size = 0x800, scoped, tag = 'input window, operand 5, single buffered']
    #allocation13 [shape = 'u8[512]{0}', space=smem, size = 0x200, scoped, tag = 'input window, operand 6, single buffered']
    #allocation14 [shape = 's32[1]{0}', space=sflag, size = 0x4, scoped, tag = 'scoped memory for tpu_custom_call.1']
    #allocation15 [shape = 'u8[512]{0}', space=smem, size = 0x200, scoped, tag = 'input window, operand 7, single buffered']
    #allocation16 [shape = 'u8[1024]{0}', space=vmem, size = 0x400, scoped, tag = 'output window, operand 0']
    %13 = vsyncpa [#allocation5], 0
    %14 = vsyncpa [#allocation3], 0
    %s15 = scalar_lea.sflag [#allocation3], 1
    %16 = vsyncpa %s15, 0
    %17 = vsyncpa [#allocation8], 0
    %s18 = scalar_lea.sflag [#allocation8], 1
    %19 = vsyncpa %s18, 0
    %20 = vsyncpa [#allocation11], 0
    %21 = vsyncpa [#allocation14], 0
    %22 = vsyncpa [#allocation4], 0
    %s23 = scalar_lea.sflag [#allocation4], 1
    %24 = vsyncpa %s23, 0
    loop: start=0, step=1, limit=4
    $region2: #{tpu_custom_call.1} parent=1 // loop_pre_header
      _
    $region3: #{tpu_custom_call.1} parent=1 // loop_header
      %s26 = sphi 0, %s30
      %p27 = scmp.ge.s32.totalorder %s26, 4
      %s33 = sphi 0, %s45
      %s34 = sphi 0, %s41
      %s35 = sphi 0, %s33
      %s36 = sphi 0, %s34
      %s37 = sphi 0, %s35
      %s38 = sphi 0, %s36
      %s46 = sphi 0, %s46
      %s48 = sphi 0, %s46
      %s49 = sphi 0, %s48
      %s63 = sphi 0, %s49
      %s71 = sphi 0, %s73
      %s74 = sphi 0, %s71
      %s75 = sphi 0, %s74
      %s91 = sphi 0, %s75
      %s99 = sphi 0, %s101
      %s102 = sphi 0, %s99
      %s103 = sphi 0, %s102
      %s119 = sphi 0, %s103
      %s127 = sphi 0, %s129
      %s130 = sphi 0, %s127
      %s131 = sphi 0, %s130
      %s147 = sphi 0, %s131
      %s151 = sphi 0, %s151
      %s153 = sphi 0, %s151
      %s154 = sphi 0, %s153
      %s168 = sphi 0, %s154
      %s172 = sphi 0, %s172
      %s174 = sphi 0, %s172
      %s175 = sphi 0, %s174
      %s189 = sphi 0, %s175
      %s193 = sphi 0, %s193
      %s195 = sphi 0, %s193
      %s196 = sphi 0, %s195
      %s210 = sphi 0, %s196
      %s214 = sphi 0, %s214
      %s216 = sphi 0, %s214
      %s217 = sphi 0, %s216
      %s231 = sphi 0, %s217
      %s239 = sphi 0, %s241
      %s242 = sphi 0, %s239
      %s243 = sphi 0, %s242
      %s259 = sphi 0, %s243
    $region4: #{tpu_custom_call.1} parent=1 // loop_header_branch
      %29 = sbr.rel (%p27) target = $region8
    $region5: #{tpu_custom_call.1} parent=1 // loop_body
      %s31 = ssub.s32 %s26, 1
      %s32 = ssub.s32 %s26, 2
      %s39 = sadd.s32 1, %s34
      %p40 = scmp.ge.s32.totalorder %s39, 1
      %s41 = scalar_select %p40, 0, %s39
      %s42 = sadd.s32 1, %s33
      %s43 = scalar_select %p40, %s42, %s33
      %p44 = scmp.ge.s32.totalorder %s43, 2
      %s45 = scalar_select %p44, 0, %s43
      %s47 = sadd.s32 %s46, 1
      %p50 = scmp.eq.s32.totalorder %s26, 1
      %p51 = scmp.ne.s32.totalorder %s46, %s48
      %p52 = scmp.eq.s32.totalorder %s26, 0
      %p53 = por %p51, %p52
      %p54 = scmp.ne.s32.totalorder %s46, %s48
      %p55 = scmp.eq.s32.totalorder %s31, 1
      %p56 = por %p54, %p55
      %p57 = scmp.ne.s32.totalorder %s48, %s49
      %p58 = scmp.eq.s32.totalorder %s31, 0
      %p59 = por %p57, %p58
      %p60 = scmp.ne.s32.totalorder %s48, %s49
      %p61 = scmp.eq.s32.totalorder %s32, 1
      %p62 = por %p60, %p61
      %p64 = scmp.ne.s32.totalorder %s49, %s63
      %p65 = scmp.eq.s32.totalorder %s32, 0
      %p66 = por %p64, %p65
      %s67 = ssub.s32 %s33, %s45
      %s68 = ssub.s32 %s34, %s41
      %s69 = sor.u32 %s67, %s68
      %p70 = scmp.eq.s32.totalorder %s69, 0
      %s72 = sadd.s32 %s71, 1
      %s73 = scalar_select %p70, %s71, %s72
      %p76 = pneg %p70
      %p77 = scmp.eq.s32.totalorder %s26, 1
      %p78 = por %p76, %p77
      %p79 = scmp.ne.s32.totalorder %s71, %s74
      %p80 = scmp.eq.s32.totalorder %s26, 0
      %p81 = por %p79, %p80
      %p82 = scmp.ne.s32.totalorder %s71, %s74
      %p83 = scmp.eq.s32.totalorder %s31, 1
      %p84 = por %p82, %p83
      %p85 = scmp.ne.s32.totalorder %s74, %s75
      %p86 = scmp.eq.s32.totalorder %s31, 0
      %p87 = por %p85, %p86
      %p88 = scmp.ne.s32.totalorder %s74, %s75
      %p89 = scmp.eq.s32.totalorder %s32, 1
      %p90 = por %p88, %p89
      %p92 = scmp.ne.s32.totalorder %s75, %s91
      %p93 = scmp.eq.s32.totalorder %s32, 0
      %p94 = por %p92, %p93
      %s95 = ssub.s32 %s33, %s45
      %s96 = ssub.s32 %s34, %s41
      %s97 = sor.u32 %s95, %s96
      %p98 = scmp.eq.s32.totalorder %s97, 0
      %s100 = sadd.s32 %s99, 1
      %s101 = scalar_select %p98, %s99, %s100
      %p104 = pneg %p98
      %p105 = scmp.eq.s32.totalorder %s26, 1
      %p106 = por %p104, %p105
      %p107 = scmp.ne.s32.totalorder %s99, %s102
      %p108 = scmp.eq.s32.totalorder %s26, 0
      %p109 = por %p107, %p108
      %p110 = scmp.ne.s32.totalorder %s99, %s102
      %p111 = scmp.eq.s32.totalorder %s31, 1
      %p112 = por %p110, %p111
      %p113 = scmp.ne.s32.totalorder %s102, %s103
      %p114 = scmp.eq.s32.totalorder %s31, 0
      %p115 = por %p113, %p114
      %p116 = scmp.ne.s32.totalorder %s102, %s103
      %p117 = scmp.eq.s32.totalorder %s32, 1
      %p118 = por %p116, %p117
      %p120 = scmp.ne.s32.totalorder %s103, %s119
      %p121 = scmp.eq.s32.totalorder %s32, 0
      %p122 = por %p120, %p121
      %s123 = ssub.s32 %s33, %s45
      %s124 = ssub.s32 %s34, %s41
      %s125 = sor.u32 %s123, %s124
      %p126 = scmp.eq.s32.totalorder %s125, 0
      %s128 = sadd.s32 %s127, 1
      %s129 = scalar_select %p126, %s127, %s128
      %p132 = pneg %p126
      %p133 = scmp.eq.s32.totalorder %s26, 1
      %p134 = por %p132, %p133
      %p135 = scmp.ne.s32.totalorder %s127, %s130
      %p136 = scmp.eq.s32.totalorder %s26, 0
      %p137 = por %p135, %p136
      %p138 = scmp.ne.s32.totalorder %s127, %s130
      %p139 = scmp.eq.s32.totalorder %s31, 1
      %p140 = por %p138, %p139
      %p141 = scmp.ne.s32.totalorder %s130, %s131
      %p142 = scmp.eq.s32.totalorder %s31, 0
      %p143 = por %p141, %p142
      %p144 = scmp.ne.s32.totalorder %s130, %s131
      %p145 = scmp.eq.s32.totalorder %s32, 1
      %p146 = por %p144, %p145
      %p148 = scmp.ne.s32.totalorder %s131, %s147
      %p149 = scmp.eq.s32.totalorder %s32, 0
      %p150 = por %p148, %p149
      %s152 = sadd.s32 %s151, 1
      %p155 = scmp.eq.s32.totalorder %s26, 1
      %p156 = scmp.ne.s32.totalorder %s151, %s153
      %p157 = scmp.eq.s32.totalorder %s26, 0
      %p158 = por %p156, %p157
      %p159 = scmp.ne.s32.totalorder %s151, %s153
      %p160 = scmp.eq.s32.totalorder %s31, 1
      %p161 = por %p159, %p160
      %p162 = scmp.ne.s32.totalorder %s153, %s154
      %p163 = scmp.eq.s32.totalorder %s31, 0
      %p164 = por %p162, %p163
      %p165 = scmp.ne.s32.totalorder %s153, %s154
      %p166 = scmp.eq.s32.totalorder %s32, 1
      %p167 = por %p165, %p166
      %p169 = scmp.ne.s32.totalorder %s154, %s168
      %p170 = scmp.eq.s32.totalorder %s32, 0
      %p171 = por %p169, %p170
      %s173 = sadd.s32 %s172, 1
      %p176 = scmp.eq.s32.totalorder %s26, 1
      %p177 = scmp.ne.s32.totalorder %s172, %s174
      %p178 = scmp.eq.s32.totalorder %s26, 0
      %p179 = por %p177, %p178
      %p180 = scmp.ne.s32.totalorder %s172, %s174
      %p181 = scmp.eq.s32.totalorder %s31, 1
      %p182 = por %p180, %p181
      %p183 = scmp.ne.s32.totalorder %s174, %s175
      %p184 = scmp.eq.s32.totalorder %s31, 0
      %p185 = por %p183, %p184
      %p186 = scmp.ne.s32.totalorder %s174, %s175
      %p187 = scmp.eq.s32.totalorder %s32, 1
      %p188 = por %p186, %p187
      %p190 = scmp.ne.s32.totalorder %s175, %s189
      %p191 = scmp.eq.s32.totalorder %s32, 0
      %p192 = por %p190, %p191
      %s194 = sadd.s32 %s193, 1
      %p197 = scmp.eq.s32.totalorder %s26, 1
      %p198 = scmp.ne.s32.totalorder %s193, %s195
      %p199 = scmp.eq.s32.totalorder %s26, 0
      %p200 = por %p198, %p199
      %p201 = scmp.ne.s32.totalorder %s193, %s195
      %p202 = scmp.eq.s32.totalorder %s31, 1
      %p203 = por %p201, %p202
      %p204 = scmp.ne.s32.totalorder %s195, %s196
      %p205 = scmp.eq.s32.totalorder %s31, 0
      %p206 = por %p204, %p205
      %p207 = scmp.ne.s32.totalorder %s195, %s196
      %p208 = scmp.eq.s32.totalorder %s32, 1
      %p209 = por %p207, %p208
      %p211 = scmp.ne.s32.totalorder %s196, %s210
      %p212 = scmp.eq.s32.totalorder %s32, 0
      %p213 = por %p211, %p212
      %s215 = sadd.s32 %s214, 1
      %p218 = scmp.eq.s32.totalorder %s26, 1
      %p219 = scmp.ne.s32.totalorder %s214, %s216
      %p220 = scmp.eq.s32.totalorder %s26, 0
      %p221 = por %p219, %p220
      %p222 = scmp.ne.s32.totalorder %s214, %s216
      %p223 = scmp.eq.s32.totalorder %s31, 1
      %p224 = por %p222, %p223
      %p225 = scmp.ne.s32.totalorder %s216, %s217
      %p226 = scmp.eq.s32.totalorder %s31, 0
      %p227 = por %p225, %p226
      %p228 = scmp.ne.s32.totalorder %s216, %s217
      %p229 = scmp.eq.s32.totalorder %s32, 1
      %p230 = por %p228, %p229
      %p232 = scmp.ne.s32.totalorder %s217, %s231
      %p233 = scmp.eq.s32.totalorder %s32, 0
      %p234 = por %p232, %p233
      %s235 = ssub.s32 %s33, %s45
      %s236 = ssub.s32 %s34, %s41
      %s237 = sor.u32 %s235, %s236
      %p238 = scmp.eq.s32.totalorder %s237, 0
      %s240 = sadd.s32 %s239, 1
      %s241 = scalar_select %p238, %s239, %s240
      %p244 = pneg %p238
      %p245 = scmp.eq.s32.totalorder %s26, 1
      %p246 = por %p244, %p245
      %p247 = scmp.ne.s32.totalorder %s239, %s242
      %p248 = scmp.eq.s32.totalorder %s26, 0
      %p249 = por %p247, %p248
      %p250 = scmp.ne.s32.totalorder %s239, %s242
      %p251 = scmp.eq.s32.totalorder %s31, 1
      %p252 = por %p250, %p251
      %p253 = scmp.ne.s32.totalorder %s242, %s243
      %p254 = scmp.eq.s32.totalorder %s31, 0
      %p255 = por %p253, %p254
      %p256 = scmp.ne.s32.totalorder %s242, %s243
      %p257 = scmp.eq.s32.totalorder %s32, 1
      %p258 = por %p256, %p257
      %p260 = scmp.ne.s32.totalorder %s243, %s259
      %p261 = scmp.eq.s32.totalorder %s32, 0
      %p262 = por %p260, %p261
      %p263 = scmp.le.s32.totalorder 1, %s26
      %p264 = scmp.lt.s32.totalorder %s26, 3
      %p265 = pnand %p263, %p264
      %p266 = pneg %p265
      // Predicated region
      $region9: #{tpu_custom_call.1} parent=5 // pred_check
        _
      $region10: #{tpu_custom_call.1} parent=5 // pred_check_branch
        %268 = sbr.rel (%p265) target = $region12
      $region11: #{tpu_custom_call.1} parent=5 // pred_region
        %s269 = ssub.s32 %s26, 1
        // Predicated region
        $region13: #{tpu_custom_call.1} parent=11 // pred_check
          %p270 = pneg %p59
        $region14: #{tpu_custom_call.1} parent=11 // pred_check_branch
          %272 = sbr.rel (%p270) target = $region16
        $region15: #{tpu_custom_call.1} parent=11 // pred_region
          %s274 = ssub.s32 64, 64
          %275 = vsyncadd [#allocation5], %s274
          %s277 = sshll.u32 %s0, 4
          %s278 = int_to_ptr.vmem [resolvable:$true] %s277
          %280 = dma.vmem_to_smem %s278, 64, [#allocation2], [#allocation5]
        $region16: #{tpu_custom_call.1} parent=11 // pred_fallthru
          _
        // Predicated region
        $region17: #{tpu_custom_call.1} parent=11 // pred_check
          %p281 = pneg %p164
        $region18: #{tpu_custom_call.1} parent=11 // pred_check_branch
          %283 = sbr.rel (%p281) target = $region20
        $region19: #{tpu_custom_call.1} parent=11 // pred_region
          %s285 = ssub.s32 64, 64
          %286 = vsyncadd [#allocation11], %s285
          %s288 = sshll.u32 %s4, 4
          %s289 = int_to_ptr.vmem [resolvable:$true] %s288
          %291 = dma.vmem_to_smem %s289, 64, [#allocation10], [#allocation11]
        $region20: #{tpu_custom_call.1} parent=11 // pred_fallthru
          _
        // Predicated region
        $region21: #{tpu_custom_call.1} parent=11 // pred_check
          %p292 = pneg %p185
        $region22: #{tpu_custom_call.1} parent=11 // pred_check_branch
          %294 = sbr.rel (%p292) target = $region24
        $region23: #{tpu_custom_call.1} parent=11 // pred_region
          %s296 = ssub.s32 64, 64
          %297 = vsyncadd [#allocation11], %s296
          %s299 = sshll.u32 %s5, 4
          %s300 = int_to_ptr.vmem [resolvable:$true] %s299
          %302 = dma.vmem_to_smem %s300, 64, [#allocation12], [#allocation11]
        $region24: #{tpu_custom_call.1} parent=11 // pred_fallthru
          _
        // Predicated region
        $region25: #{tpu_custom_call.1} parent=11 // pred_check
          %p303 = pneg %p206
        $region26: #{tpu_custom_call.1} parent=11 // pred_check_branch
          %305 = sbr.rel (%p303) target = $region28
        $region27: #{tpu_custom_call.1} parent=11 // pred_region
          %s307 = ssub.s32 16, 16
          %308 = vsyncadd [#allocation14], %s307
          %s310 = sshll.u32 %s6, 4
          %s311 = int_to_ptr.vmem [resolvable:$true] %s310
          %313 = dma.vmem_to_smem %s311, 16, [#allocation13], [#allocation14]
        $region28: #{tpu_custom_call.1} parent=11 // pred_fallthru
          _
        // Predicated region
        $region29: #{tpu_custom_call.1} parent=11 // pred_check
          %p314 = pneg %p227
        $region30: #{tpu_custom_call.1} parent=11 // pred_check_branch
          %316 = sbr.rel (%p314) target = $region32
        $region31: #{tpu_custom_call.1} parent=11 // pred_region
          %s318 = ssub.s32 16, 16
          %319 = vsyncadd [#allocation14], %s318
          %s321 = sshll.u32 %s7, 4
          %s322 = int_to_ptr.vmem [resolvable:$true] %s321
          %324 = dma.vmem_to_smem %s322, 16, [#allocation15], [#allocation14]
        $region32: #{tpu_custom_call.1} parent=11 // pred_fallthru
          _
      $region12: #{tpu_custom_call.1} parent=5 // pred_fallthru
        _
      %p325 = scmp.lt.s32.totalorder %s26, 2
      // Predicated region
      $region33: #{tpu_custom_call.1} parent=5 // pred_check
        %p326 = pneg %p325
      $region34: #{tpu_custom_call.1} parent=5 // pred_check_branch
        %328 = sbr.rel (%p326) target = $region36
      $region35: #{tpu_custom_call.1} parent=5 // pred_region
        // Predicated region
        $region37: #{tpu_custom_call.1} parent=35 // pred_check
          %p329 = pneg %p81
        $region38: #{tpu_custom_call.1} parent=35 // pred_check_branch
          %331 = sbr.rel (%p329) target = $region40
        $region39: #{tpu_custom_call.1} parent=35 // pred_region
          %s332 = sand.u32 %s71, 1
          %s333 = scalar_lea.sflag [#allocation3], %s332
          %s334 = sand.u32 %s71, 1
          %s335 = smul.addr %s334, 32
          %s336 = scalar_lea.vmem [#allocation6], %s335
          %s338 = ssub.s32 512, 512
          %339 = vsyncadd %s333, %s338
          %s340 = smul.addr %s33, 4
          %s341 = sadd.s32 %s34, %s340
          %s342 = smul.addr %s341, 128
          %s343 = scalar_lea.hbm %s1, %s342
          %s344 = sshll.u32 %s336, 4
          %s345 = int_to_ptr.vmem [resolvable:$true] %s344
          %350 = dma.hbm_to_vmem [thread:$0]  %s343, 512, %s345, %s333, 128, 128, 8
        $region40: #{tpu_custom_call.1} parent=35 // pred_fallthru
          _
        // Predicated region
        $region41: #{tpu_custom_call.1} parent=35 // pred_check
          %p351 = pneg %p109
        $region42: #{tpu_custom_call.1} parent=35 // pred_check_branch
          %353 = sbr.rel (%p351) target = $region44
        $region43: #{tpu_custom_call.1} parent=35 // pred_region
          %s354 = sand.u32 %s26, 1
          %s355 = scalar_lea.sflag [#allocation8], %s354
          %s356 = sand.u32 %s99, 1
          %s357 = smul.addr %s356, 32
          %s358 = scalar_lea.vmem [#allocation7], %s357
          %s360 = ssub.s32 512, 512
          %361 = vsyncadd %s355, %s360
          %s362 = smul.addr %s33, 4
          %s363 = sadd.s32 %s34, %s362
          %s364 = smul.addr %s363, 128
          %s365 = scalar_lea.hbm %s2, %s364
          %s366 = sshll.u32 %s358, 4
          %s367 = int_to_ptr.vmem [resolvable:$true] %s366
          %372 = dma.hbm_to_vmem [thread:$0]  %s365, 512, %s367, %s355, 128, 128, 8
        $region44: #{tpu_custom_call.1} parent=35 // pred_fallthru
          _
        // Predicated region
        $region45: #{tpu_custom_call.1} parent=35 // pred_check
          %p373 = pneg %p137
        $region46: #{tpu_custom_call.1} parent=35 // pred_check_branch
          %375 = sbr.rel (%p373) target = $region48
        $region47: #{tpu_custom_call.1} parent=35 // pred_region
          %s376 = sand.u32 %s26, 1
          %s377 = scalar_lea.sflag [#allocation8], %s376
          %s378 = sand.u32 %s127, 1
          %s379 = smul.addr %s378, 32
          %s380 = scalar_lea.vmem [#allocation9], %s379
          %s382 = ssub.s32 512, 512
          %383 = vsyncadd %s377, %s382
          %s384 = smul.addr %s33, 4
          %s385 = sadd.s32 %s34, %s384
          %s386 = smul.addr %s385, 128
          %s387 = scalar_lea.hbm %s3, %s386
          %s388 = sshll.u32 %s380, 4
          %s389 = int_to_ptr.vmem [resolvable:$true] %s388
          %394 = dma.hbm_to_vmem [thread:$0]  %s387, 512, %s389, %s377, 128, 128, 8
        $region48: #{tpu_custom_call.1} parent=35 // pred_fallthru
          _
      $region36: #{tpu_custom_call.1} parent=5 // pred_fallthru
        _
      %p395 = scmp.le.s32.totalorder 1, %s26
      %p396 = scmp.lt.s32.totalorder %s26, 3
      %p397 = pnand %p395, %p396
      %p398 = pneg %p397
      // Predicated region
      $region49: #{tpu_custom_call.1} parent=5 // pred_check
        _
      $region50: #{tpu_custom_call.1} parent=5 // pred_check_branch
        %400 = sbr.rel (%p397) target = $region52
      $region51: #{tpu_custom_call.1} parent=5 // pred_region
        %s401 = ssub.s32 %s26, 1
        // Predicated region
        $region53: #{tpu_custom_call.1} parent=51 // pred_check
          %p402 = pneg %p59
        $region54: #{tpu_custom_call.1} parent=51 // pred_check_branch
          %404 = sbr.rel (%p402) target = $region56
        $region55: #{tpu_custom_call.1} parent=51 // pred_region
          %405 = dma.done [#allocation5], 64
        $region56: #{tpu_custom_call.1} parent=51 // pred_fallthru
          _
        %s406 = sand.u32 %s74, 1
        %s407 = scalar_lea.sflag [#allocation3], %s406
        %s408 = sand.u32 %s74, 1
        %s409 = smul.addr %s408, 32
        %s410 = scalar_lea.vmem [#allocation6], %s409
        // Predicated region
        $region57: #{tpu_custom_call.1} parent=51 // pred_check
          %p411 = pneg %p87
        $region58: #{tpu_custom_call.1} parent=51 // pred_check_branch
          %413 = sbr.rel (%p411) target = $region60
        $region59: #{tpu_custom_call.1} parent=51 // pred_region
          %414 = dma.done %s407, 512
        $region60: #{tpu_custom_call.1} parent=51 // pred_fallthru
          _
        %s415 = sand.u32 %s31, 1
        %s416 = scalar_lea.sflag [#allocation8], %s415
        %s417 = sand.u32 %s102, 1
        %s418 = smul.addr %s417, 32
        %s419 = scalar_lea.vmem [#allocation7], %s418
        // Predicated region
        $region61: #{tpu_custom_call.1} parent=51 // pred_check
          %p420 = pneg %p115
        $region62: #{tpu_custom_call.1} parent=51 // pred_check_branch
          %422 = sbr.rel (%p420) target = $region64
        $region63: #{tpu_custom_call.1} parent=51 // pred_region
          %423 = dma.done %s416, 512
        $region64: #{tpu_custom_call.1} parent=51 // pred_fallthru
          _
        %s424 = sand.u32 %s31, 1
        %s425 = scalar_lea.sflag [#allocation8], %s424
        %s426 = sand.u32 %s130, 1
        %s427 = smul.addr %s426, 32
        %s428 = scalar_lea.vmem [#allocation9], %s427
        // Predicated region
        $region65: #{tpu_custom_call.1} parent=51 // pred_check
          %p429 = pneg %p143
        $region66: #{tpu_custom_call.1} parent=51 // pred_check_branch
          %431 = sbr.rel (%p429) target = $region68
        $region67: #{tpu_custom_call.1} parent=51 // pred_region
          %432 = dma.done %s425, 512
        $region68: #{tpu_custom_call.1} parent=51 // pred_fallthru
          _
        // Predicated region
        $region69: #{tpu_custom_call.1} parent=51 // pred_check
          %p433 = pneg %p164
        $region70: #{tpu_custom_call.1} parent=51 // pred_check_branch
          %435 = sbr.rel (%p433) target = $region72
        $region71: #{tpu_custom_call.1} parent=51 // pred_region
          %436 = dma.done [#allocation11], 64
        $region72: #{tpu_custom_call.1} parent=51 // pred_fallthru
          _
        // Predicated region
        $region73: #{tpu_custom_call.1} parent=51 // pred_check
          %p437 = pneg %p185
        $region74: #{tpu_custom_call.1} parent=51 // pred_check_branch
          %439 = sbr.rel (%p437) target = $region76
        $region75: #{tpu_custom_call.1} parent=51 // pred_region
          %440 = dma.done [#allocation11], 64
        $region76: #{tpu_custom_call.1} parent=51 // pred_fallthru
          _
        // Predicated region
        $region77: #{tpu_custom_call.1} parent=51 // pred_check
          %p441 = pneg %p206
        $region78: #{tpu_custom_call.1} parent=51 // pred_check_branch
          %443 = sbr.rel (%p441) target = $region80
        $region79: #{tpu_custom_call.1} parent=51 // pred_region
          %444 = dma.done [#allocation14], 16
        $region80: #{tpu_custom_call.1} parent=51 // pred_fallthru
          _
        // Predicated region
        $region81: #{tpu_custom_call.1} parent=51 // pred_check
          %p445 = pneg %p227
        $region82: #{tpu_custom_call.1} parent=51 // pred_check_branch
          %447 = sbr.rel (%p445) target = $region84
        $region83: #{tpu_custom_call.1} parent=51 // pred_region
          %448 = dma.done [#allocation14], 16
        $region84: #{tpu_custom_call.1} parent=51 // pred_fallthru
          _
        %449 = sfence
        %p450 = pneg %p59
        %p451 = pneg %p56
        %s452 = sand.u32 %s74, 1
        %s453 = scalar_lea.sflag [#allocation3], %s452
        %s454 = sand.u32 %s74, 1
        %s455 = smul.addr %s454, 32
        %s456 = scalar_lea.vmem [#allocation6], %s455
        %p457 = pneg %p87
        %p458 = pneg %p84
        %s459 = sand.u32 %s31, 1
        %s460 = scalar_lea.sflag [#allocation8], %s459
        %s461 = sand.u32 %s102, 1
        %s462 = smul.addr %s461, 32
        %s463 = scalar_lea.vmem [#allocation7], %s462
        %p464 = pneg %p115
        %p465 = pneg %p112
        %s466 = sand.u32 %s31, 1
        %s467 = scalar_lea.sflag [#allocation8], %s466
        %s468 = sand.u32 %s130, 1
        %s469 = smul.addr %s468, 32
        %s470 = scalar_lea.vmem [#allocation9], %s469
        %p471 = pneg %p143
        %p472 = pneg %p140
        %p473 = pneg %p164
        %p474 = pneg %p161
        %p475 = pneg %p185
        %p476 = pneg %p182
        %p477 = pneg %p206
        %p478 = pneg %p203
        %p479 = pneg %p227
        %p480 = pneg %p224
        %p481 = pneg %p255
        %p482 = pneg %p252
        %s483 = sand.u32 %s242, 1
        %s484 = scalar_lea.sflag [#allocation4], %s483
        %s485 = sand.u32 %s242, 1
        %s486 = scalar_lea.vmem [#allocation16], %s485
        %s487 = sld [smem:[#allocation2 + %s35]]
        %s488 = sshra.s32 %s35, 7
        %s489 = sand.u32 %s35, 127
        %s490 = sadd.s32 %s488, 1
        %s491 = smul.u32 %s490, 128
        %s492 = sshra.s32 %s35, 7
        %s493 = sand.u32 %s35, 127
        %s494 = sadd.s32 %s491, %s493
        %s495 = sld [smem:[#allocation2 + %s494]]
        %s496 = sadd.s32 %s488, 2
        %s497 = smul.u32 %s496, 128
        %s498 = sadd.s32 %s497, %s493
        %s499 = sld [smem:[#allocation2 + %s498]]
        %s500 = sld [smem:[#allocation10]]
        %s501 = sld [smem:[#allocation10 + $0x1]]
        %s502 = sld [smem:[#allocation10 + $0x2]]
        %s503 = sld [smem:[#allocation10 + $0x3]]
        %s504 = sld [smem:[#allocation10 + $0x80]]
        %s505 = sld [smem:[#allocation10 + $0x81]]
        %s506 = sld [smem:[#allocation10 + $0x82]]
        %s507 = sld [smem:[#allocation10 + $0x83]]
        %s508 = sld [smem:[#allocation10 + $0x100]]
        %s509 = sld [smem:[#allocation10 + $0x101]]
        %s510 = sld [smem:[#allocation10 + $0x102]]
        %s511 = sld [smem:[#allocation10 + $0x103]]
        %s512 = sld [smem:[#allocation10 + $0x180]]
        %s513 = sld [smem:[#allocation10 + $0x181]]
        %s514 = sld [smem:[#allocation10 + $0x182]]
        %s515 = sld [smem:[#allocation10 + $0x183]]
        %s516 = sld [smem:[#allocation12]]
        %s517 = sld [smem:[#allocation12 + $0x1]]
        %s518 = sld [smem:[#allocation12 + $0x2]]
        %s519 = sld [smem:[#allocation12 + $0x3]]
        %s520 = sld [smem:[#allocation12 + $0x80]]
        %s521 = sld [smem:[#allocation12 + $0x81]]
        %s522 = sld [smem:[#allocation12 + $0x82]]
        %s523 = sld [smem:[#allocation12 + $0x83]]
        %s524 = sld [smem:[#allocation12 + $0x100]]
        %s525 = sld [smem:[#allocation12 + $0x101]]
        %s526 = sld [smem:[#allocation12 + $0x102]]
        %s527 = sld [smem:[#allocation12 + $0x103]]
        %s528 = sld [smem:[#allocation12 + $0x180]]
        %s529 = sld [smem:[#allocation12 + $0x181]]
        %s530 = sld [smem:[#allocation12 + $0x182]]
        %s531 = sld [smem:[#allocation12 + $0x183]]
        %s532 = sld [smem:[#allocation13]]
        %s533 = sld [smem:[#allocation15]]
        %s534 = smul.f32 %s499, %s533
        %s535 = sadd.f32 %s532, %s534
        %s536 = sld [smem:[#allocation13 + $0x1]]
        %s537 = sld [smem:[#allocation15 + $0x1]]
        %s538 = smul.f32 %s499, %s537
        %s539 = sadd.f32 %s536, %s538
        %s540 = sld [smem:[#allocation13 + $0x2]]
        %s541 = sld [smem:[#allocation15 + $0x2]]
        %s542 = smul.f32 %s499, %s541
        %s543 = sadd.f32 %s540, %s542
        %s544 = sld [smem:[#allocation13 + $0x3]]
        %s545 = sld [smem:[#allocation15 + $0x3]]
        %s546 = smul.f32 %s499, %s545
        %s547 = sadd.f32 %s544, %s546
        %v548 = vlaneseq
        %v549 = vshrl.u32 %v548, 7
        %v550 = vlaneseq
        %v551 = vand.u32 %v550, 127
        %v552 = vmul.u32 %v549, 128
        %v553 = vadd.s32 %v552, %v551
        %s554 = smul.u32 %s36, 1024
        %v555 = vld [vmem:[%s410] sm:$0xff]
        %s556 = sadd.s32 0, 8
        %s557 = scalar_lea.vmem %s410, %s556 [#allocation6]
        %v558 = vld [vmem:[%s557] sm:$0xff]
        %s559 = sadd.s32 0, 16
        %s560 = scalar_lea.vmem %s410, %s559 [#allocation6]
        %v561 = vld [vmem:[%s560] sm:$0xff]
        %s562 = sadd.s32 0, 24
        %s563 = scalar_lea.vmem %s410, %s562 [#allocation6]
        %v564 = vld [vmem:[%s563] sm:$0xff]
        %v565 = vld [vmem:[%s428] sm:$0xff]
        %s566 = scalar_lea.vmem %s428, %s556 [#allocation9]
        %v567 = vld [vmem:[%s566] sm:$0xff]
        %s568 = scalar_lea.vmem %s428, %s559 [#allocation9]
        %v569 = vld [vmem:[%s568] sm:$0xff]
        %s570 = scalar_lea.vmem %s428, %s562 [#allocation9]
        %v571 = vld [vmem:[%s570] sm:$0xff]
        %v572 = vld [vmem:[%s419] sm:$0xff]
        %v573 = vstv %s487
        %v574 = vmul.f32 %v572, %v573
        %v575 = vstv %s495
        %v576 = vmul.f32 %v565, %v575
        %v577 = vadd.f32 %v574, %v576
        %s578 = scalar_lea.vmem %s419, %s556 [#allocation7]
        %v579 = vld [vmem:[%s578] sm:$0xff]
        %v580 = vmul.f32 %v579, %v573
        %v581 = vmul.f32 %v567, %v575
        %v582 = vadd.f32 %v580, %v581
        %s583 = scalar_lea.vmem %s419, %s559 [#allocation7]
        %v584 = vld [vmem:[%s583] sm:$0xff]
        %v585 = vmul.f32 %v584, %v573
        %v586 = vmul.f32 %v569, %v575
        %v587 = vadd.f32 %v585, %v586
        %s588 = scalar_lea.vmem %s419, %s562 [#allocation7]
        %v589 = vld [vmem:[%s588] sm:$0xff]
        %v590 = vmul.f32 %v589, %v573
        %v591 = vmul.f32 %v571, %v575
        %v592 = vadd.f32 %v590, %v591
        %v593 = vstv %s500
        %v594 = vmul.f32 %v555, %v593
        %v595 = vstv %s504
        %v596 = vmul.f32 %v558, %v595
        %v597 = vadd.f32 %v594, %v596
        %v598 = vstv %s508
        %v599 = vmul.f32 %v561, %v598
        %v600 = vadd.f32 %v597, %v599
        %v601 = vstv %s512
        %v602 = vmul.f32 %v564, %v601
        %v603 = vadd.f32 %v600, %v602
        %v604 = vstv %s516
        %v605 = vmul.f32 %v577, %v604
        %v606 = vadd.f32 %v603, %v605
        %v607 = vstv %s520
        %v608 = vmul.f32 %v582, %v607
        %v609 = vadd.f32 %v606, %v608
        %v610 = vstv %s524
        %v611 = vmul.f32 %v587, %v610
        %v612 = vadd.f32 %v609, %v611
        %v613 = vstv %s528
        %v614 = vmul.f32 %v592, %v613
        %v615 = vadd.f32 %v612, %v614
        %v616 = vstv %s535
        %v617 = vadd.f32 %v615, %v616
        %v618 = vsub.f32 %v565, %v617
        %v619 = vand.u32 2147483647, %v618
        %v620 = vstv %s501
        %v621 = vmul.f32 %v555, %v620
        %v622 = vstv %s505
        %v623 = vmul.f32 %v558, %v622
        %v624 = vadd.f32 %v621, %v623
        %v625 = vstv %s509
        %v626 = vmul.f32 %v561, %v625
        %v627 = vadd.f32 %v624, %v626
        %v628 = vstv %s513
        %v629 = vmul.f32 %v564, %v628
        %v630 = vadd.f32 %v627, %v629
        %v631 = vstv %s517
        %v632 = vmul.f32 %v577, %v631
        %v633 = vadd.f32 %v630, %v632
        %v634 = vstv %s521
        %v635 = vmul.f32 %v582, %v634
        %v636 = vadd.f32 %v633, %v635
        %v637 = vstv %s525
        %v638 = vmul.f32 %v587, %v637
        %v639 = vadd.f32 %v636, %v638
        %v640 = vstv %s529
        %v641 = vmul.f32 %v592, %v640
        %v642 = vadd.f32 %v639, %v641
        %v643 = vstv %s539
        %v644 = vadd.f32 %v642, %v643
        %v645 = vsub.f32 %v567, %v644
        %v646 = vand.u32 2147483647, %v645
        %v647 = vadd.f32 %v619, %v646
        %v648 = vstv %s502
        %v649 = vmul.f32 %v555, %v648
        %v650 = vstv %s506
        %v651 = vmul.f32 %v558, %v650
        %v652 = vadd.f32 %v649, %v651
        %v653 = vstv %s510
        %v654 = vmul.f32 %v561, %v653
        %v655 = vadd.f32 %v652, %v654
        %v656 = vstv %s514
        %v657 = vmul.f32 %v564, %v656
        %v658 = vadd.f32 %v655, %v657
        %v659 = vstv %s518
        %v660 = vmul.f32 %v577, %v659
        %v661 = vadd.f32 %v658, %v660
        %v662 = vstv %s522
        %v663 = vmul.f32 %v582, %v662
        %v664 = vadd.f32 %v661, %v663
        %v665 = vstv %s526
        %v666 = vmul.f32 %v587, %v665
        %v667 = vadd.f32 %v664, %v666
        %v668 = vstv %s530
        %v669 = vmul.f32 %v592, %v668
        %v670 = vadd.f32 %v667, %v669
        %v671 = vstv %s543
        %v672 = vadd.f32 %v670, %v671
        %v673 = vsub.f32 %v569, %v672
        %v674 = vand.u32 2147483647, %v673
        %v675 = vadd.f32 %v647, %v674
        %v676 = vstv %s503
        %v677 = vmul.f32 %v555, %v676
        %v678 = vstv %s507
        %v679 = vmul.f32 %v558, %v678
        %v680 = vadd.f32 %v677, %v679
        %v681 = vstv %s511
        %v682 = vmul.f32 %v561, %v681
        %v683 = vadd.f32 %v680, %v682
        %v684 = vstv %s515
        %v685 = vmul.f32 %v564, %v684
        %v686 = vadd.f32 %v683, %v685
        %v687 = vstv %s519
        %v688 = vmul.f32 %v577, %v687
        %v689 = vadd.f32 %v686, %v688
        %v690 = vstv %s523
        %v691 = vmul.f32 %v582, %v690
        %v692 = vadd.f32 %v689, %v691
        %v693 = vstv %s527
        %v694 = vmul.f32 %v587, %v693
        %v695 = vadd.f32 %v692, %v694
        %v696 = vstv %s531
        %v697 = vmul.f32 %v592, %v696
        %v698 = vadd.f32 %v695, %v697
        %v699 = vstv %s547
        %v700 = vadd.f32 %v698, %v699
        %v701 = vsub.f32 %v571, %v700
        %v702 = vand.u32 2147483647, %v701
        %v703 = vadd.f32 %v675, %v702
        %s704 = smul.u32 0, 128
        %s705 = sadd.s32 %s554, %s704
        %v706 = vstv %s705
        %v707 = vadd.s32 %v553, %v706
        %vm708 = vcmp.lt.s32.totalorder %v707, 256
        %v709 = vsel %vm708, %v703, 0.0
        %v710 = vadd.f32 %v709, 0.0
        %711 = vadd.xlane.f32.xlu0 %v710
        %v712 = vpop.xlane.xlu0 %711
        %v713 = vrot.slane %v712, 4
        %v714 = vadd.f32 %v712, %v713
        %v715 = vrot.slane %v714, 2
        %v716 = vadd.f32 %v714, %v715
        %v717 = vrot.slane %v716, 1
        %v718 = vadd.f32 %v716, %v717
        %s719 = vtos %v718
        %v720 = vstv %s719
        %721 = vst [vmem:[%s486] sm:$0x1] %v720
        %s722 = sand.u32 %s242, 1
        %s723 = scalar_lea.sflag [#allocation4], %s722
        %s724 = sand.u32 %s242, 1
        %s725 = scalar_lea.vmem [#allocation16], %s724
        // Predicated region
        $region85: #{tpu_custom_call.1} parent=51 // pred_check
          %p726 = pneg %p252
        $region86: #{tpu_custom_call.1} parent=51 // pred_check_branch
          %728 = sbr.rel (%p726) target = $region88
        $region87: #{tpu_custom_call.1} parent=51 // pred_region
          %s730 = ssub.s32 16, 16
          %731 = vsyncadd %s723, %s730
          %s732 = sadd.s32 %s36, %s35
          %s733 = smul.addr %s732, 16
          %s734 = scalar_lea.hbm %s8, %s733
          %s736 = sshll.u32 %s725, 4
          %s737 = int_to_ptr.vmem [resolvable:$true] %s736
          %739 = dma.vmem_to_hbm [thread:$0]  %s737, 16, %s734, %s723
        $region88: #{tpu_custom_call.1} parent=51 // pred_fallthru
          _
      $region52: #{tpu_custom_call.1} parent=5 // pred_fallthru
        _
      %p740 = scmp.le.s32.totalorder 2, %s26
      // Predicated region
      $region89: #{tpu_custom_call.1} parent=5 // pred_check
        %p741 = pneg %p740
      $region90: #{tpu_custom_call.1} parent=5 // pred_check_branch
        %743 = sbr.rel (%p741) target = $region92
      $region91: #{tpu_custom_call.1} parent=5 // pred_region
        %s744 = ssub.s32 %s26, 2
        // Predicated region
        $region93: #{tpu_custom_call.1} parent=91 // pred_check
          %p745 = pneg %p258
        $region94: #{tpu_custom_call.1} parent=91 // pred_check_branch
          %747 = sbr.rel (%p745) target = $region96
        $region95: #{tpu_custom_call.1} parent=91 // pred_region
          %s748 = sand.u32 %s243, 1
          %s749 = scalar_lea.sflag [#allocation4], %s748
          %s750 = sand.u32 %s243, 1
          %s751 = scalar_lea.vmem [#allocation16], %s750
          %752 = dma.done %s749, 16
        $region96: #{tpu_custom_call.1} parent=91 // pred_fallthru
          _
      $region92: #{tpu_custom_call.1} parent=5 // pred_fallthru
        _
    $region6: #{tpu_custom_call.1} parent=1 // loop_footer
      %s30 = sadd.s32 1, %s26
    $region7: #{tpu_custom_call.1} parent=1 // loop_footer_branch
      %25 = sbr.rel target = $region3
    $region8: #{tpu_custom_call.1} parent=1 // loop_exit
      _
    %753 = vsyncpa [#allocation3], 1
    %s754 = scalar_lea.sflag [#allocation3], 1
    %755 = vsyncpa %s754, 1
    %756 = vsyncpa [#allocation8], 1
    %s757 = scalar_lea.sflag [#allocation8], 1
    %758 = vsyncpa %s757, 1
    %759 = vsyncpa [#allocation4], 1
    %s760 = scalar_lea.sflag [#allocation4], 1
    %761 = vsyncpa %s760, 1
    %762 = vsyncpa [#allocation5], 1
    %s763 = scalar_lea.sflag [#allocation5], 1
    %764 = vsyncpa %s763, 1
    %765 = vsyncpa [#allocation11], 1
    %766 = vsyncpa [#allocation14], 1

</llo_original>
